<compile_context>
chip_gen: v7x
topology: tpu7x:2x2x1
jax: 0.10.0
libtpu: 0.0.40
codegen_flags: <defaults>
</compile_context>

<pallas_src>
import jax
import jax.numpy as jnp
from jax.experimental import pallas as pl
from jax.experimental.pallas import tpu as pltpu

EPS = 1e-5

# Row indices of the (1, H) parameter rows inside the packed slab.
(R_TE_W1, R_TE_B1, R_TE_B2, R_B1, R_G1, R_BETA1, R_B2, R_G2, R_BETA2) = range(9)
N_ROWS = 9


def _silu(v):
    return v * jax.nn.sigmoid(v)


def _layernorm_onepass(v, gamma, beta, inv_d):
    # Single pass over the lane axis: var = E[x^2] - mu^2.
    s1 = jnp.sum(v, axis=-1, keepdims=True)
    s2 = jnp.sum(v * v, axis=-1, keepdims=True)
    mu = s1 * inv_d
    var = s2 * inv_d - mu * mu
    return (v - mu) * jax.lax.rsqrt(var + EPS) * gamma + beta


def _make_kernel(d_in, d_hidden, num_step):
    H = d_hidden
    o_w1x, o_w1t, o_tew2, o_w2 = 0, d_in, d_in + H, d_in + 2 * H
    o_rows = d_in + 3 * H
    inv_h = 1.0 / float(H)
    inv_num_step = 1.0 / float(num_step)

    def kernel(t_ref, x_ref, p_ref, w3b_ref, out_ref):
        f32 = jnp.float32
        rows = p_ref[pl.ds(o_rows, N_ROWS), :]          # (9, H) bias / LN rows
        r = lambda i: rows[i:i + 1, :]                  # static slice -> (1, H)

        # ---- time embedding as ONE (1, H) row (t identical across the batch) ----
        s = t_ref[0, 0] * inv_num_step                  # SMEM scalar; /num_step in-kernel
        h = _silu(s * r(R_TE_W1) + r(R_TE_B1))          # Linear(1, H) + SiLU
        te_w2 = p_ref[pl.ds(o_tew2, H), :]
        t_emb = jnp.dot(h, te_w2, preferred_element_type=f32) + r(R_TE_B2)   # (1, H)

        # ---- Linear(d_in + H, H) over cat([x, t_emb]) as a split matmul ----
        w1x = p_ref[pl.ds(o_w1x, d_in), :]
        w1t = p_ref[pl.ds(o_w1t, H), :]
        t_row = jnp.dot(t_emb, w1t, preferred_element_type=f32) + r(R_B1)    # (1, H)
        h1 = jnp.dot(x_ref[...], w1x, preferred_element_type=f32) + t_row    # bcast add
        h1 = _silu(_layernorm_onepass(h1, r(R_G1), r(R_BETA1), inv_h))

        # ---- Linear(H, H) -> LayerNorm -> SiLU ----
        w2 = p_ref[pl.ds(o_w2, H), :]
        h2 = jnp.dot(h1, w2, preferred_element_type=f32) + r(R_B2)
        h2 = _silu(_layernorm_onepass(h2, r(R_G2), r(R_BETA2), inv_h))

        # ---- Linear(H, d_out), lane-dense padded output ----
        w3 = w3b_ref[pl.ds(0, H), :]
        b3 = w3b_ref[pl.ds(H, 1), :]
        out_ref[...] = (jnp.dot(h2, w3, preferred_element_type=f32) + b3
                        ).astype(out_ref.dtype)

    return kernel


def make_params(key, d_in, d_hidden, d_out):
    """Deterministic params mirroring the PyTorch module. Weights are (fan_in, fan_out)."""
    ks = jax.random.split(key, 5)

    def lin(k, fan_in, fan_out):
        bound = 1.0 / jnp.sqrt(jnp.float32(fan_in))
        kw, kb = jax.random.split(k)
        w = jax.random.uniform(kw, (fan_in, fan_out), jnp.float32, -bound, bound)
        b = jax.random.uniform(kb, (1, fan_out), jnp.float32, -bound, bound)
        return w, b

    te_w1, te_b1 = lin(ks[0], 1, d_hidden)
    te_w2, te_b2 = lin(ks[1], d_hidden, d_hidden)
    w1, b1 = lin(ks[2], d_in + d_hidden, d_hidden)
    w2, b2 = lin(ks[3], d_hidden, d_hidden)
    w3, b3 = lin(ks[4], d_hidden, d_out)
    ones = jnp.ones((1, d_hidden), jnp.float32)
    zeros = jnp.zeros((1, d_hidden), jnp.float32)
    return dict(te_w1=te_w1, te_b1=te_b1, te_w2=te_w2, te_b2=te_b2,
                w1=w1, b1=b1, g1=ones, beta1=zeros,
                w2=w2, b2=b2, g2=ones, beta2=zeros,
                w3=w3, b3=b3)


def pack_params(raw, d_in, d_hidden, d_out):
    """Pack 15 tensors into 2 VMEM slabs (fewer, bigger DMAs)."""
    H = d_hidden
    w1x, w1t = raw["w1"][:d_in, :], raw["w1"][d_in:, :]      # split cat([x, t_emb])
    rows = jnp.concatenate([raw["te_w1"], raw["te_b1"], raw["te_b2"],
                            raw["b1"], raw["g1"], raw["beta1"],
                            raw["b2"], raw["g2"], raw["beta2"]], axis=0)   # (9, H)
    packed = jnp.concatenate([w1x, w1t, raw["te_w2"], raw["w2"], rows], axis=0)

    d_out_pad = max(128, 128 * ((d_out + 127) // 128))       # lane-dense output width
    w3b = jnp.zeros((H + 1, d_out_pad), jnp.float32)
    w3b = w3b.at[:H, :d_out].set(raw["w3"]).at[H, :d_out].set(raw["b3"][0])
    return dict(packed=packed, w3b=w3b, dims=(d_in, H, d_out, d_out_pad))


def mlp_diffusion_forward(packed, x, timesteps, num_step):
    """x: (B, d_in) f32; timesteps: scalar (broadcast to the batch, as in the module)."""
    B, d_in = x.shape
    p_din, H, d_out, d_out_pad = packed["dims"]
    assert d_in == p_din

    # scalar timestep -> (1,1) f32 in SMEM (division by num_step happens in-kernel)
    t = jnp.asarray(timesteps, jnp.float32).reshape(1, 1)

    # batch grid: shards a large B across TensorCores on v7x; (1,) at toy size
    block_b = 512 if (B > 512 and B % 512 == 0) else B
    grid = (B // block_b,)

    kernel = _make_kernel(d_in, H, num_step)
    p_shape = packed["packed"].shape
    w_shape = packed["w3b"].shape

    out_pad = pl.pallas_call(
        kernel,
        out_shape=jax.ShapeDtypeStruct((B, d_out_pad), jnp.float32),
        grid=grid,
        in_specs=[
            pl.BlockSpec(memory_space=pltpu.MemorySpace.SMEM),     # timestep scalar
            pl.BlockSpec((block_b, d_in), lambda i: (i, 0)),       # x, batch-tiled
            pl.BlockSpec(p_shape, lambda i: (0, 0)),               # packed weights/rows
            pl.BlockSpec(w_shape, lambda i: (0, 0)),               # w3 | b3 (lane-dense)
        ],
        out_specs=pl.BlockSpec((block_b, d_out_pad), lambda i: (i, 0)),
        compiler_params=pltpu.CompilerParams(
            dimension_semantics=("parallel",)),
    )(t, x, packed["packed"], packed["w3b"])

    return out_pad[:, :d_out] if d_out != d_out_pad else out_pad


def reference_forward(raw, x, timesteps, num_step):
    """Pure-JAX reference mirroring the PyTorch module exactly."""
    B = x.shape[0]
    t = jnp.full((B, 1), jnp.float32(timesteps) / jnp.float32(num_step), jnp.float32)
    h = _silu(t @ raw["te_w1"] + raw["te_b1"])
    t_emb = h @ raw["te_w2"] + raw["te_b2"]
    xt = jnp.concatenate([x, t_emb], axis=-1)

    def ln(v, g, b):
        mu = jnp.mean(v, -1, keepdims=True)
        var = jnp.mean((v - mu) ** 2, -1, keepdims=True)
        return (v - mu) * jax.lax.rsqrt(var + EPS) * g + b

    h1 = _silu(ln(xt @ raw["w1"] + raw["b1"], raw["g1"], raw["beta1"]))
    h2 = _silu(ln(h1 @ raw["w2"] + raw["b2"], raw["g2"], raw["beta2"]))
    return h2 @ raw["w3"] + raw["b3"]


if __name__ == "__main__":
    B, d_in, d_hidden, d_out, num_step = 8, 16, 32, 16, 100

    key = jax.random.PRNGKey(0)
    kx, kp = jax.random.split(key)
    x = jax.random.normal(kx, (B, d_in), jnp.float32)
    timesteps = 7  # scalar timestep, expanded over the batch (matches torch .expand())

    raw = make_params(kp, d_in, d_hidden, d_out)
    packed = pack_params(raw, d_in, d_hidden, d_out)

    out = mlp_diffusion_forward(packed, x, timesteps, num_step)
    out = jax.block_until_ready(out)

    ref = reference_forward(raw, x, timesteps, num_step)
    assert out.shape == (B, d_out)
    assert jnp.allclose(out, ref, atol=1e-4, rtol=1e-4), "mismatch vs JAX reference"

    print("KERNEL_OK")
</pallas_src>

<mosaic_0001>
module attributes {stable_mosaic.version = 11 : i64} {
  func.func @kernel(%arg0: i32, %arg1: memref<1x1xf32, #tpu.memory_space<smem>>, %arg2: memref<8x16xf32, #tpu.memory_space<vmem>>, %arg3: memref<121x32xf32, #tpu.memory_space<vmem>>, %arg4: memref<33x128xf32, #tpu.memory_space<vmem>>, %arg5: memref<8x128xf32, #tpu.memory_space<vmem>>) attributes {dimension_semantics = [#tpu.dimension_semantics<parallel>], iteration_bounds = array<i64: 1>, scalar_prefetch = 0 : i64, scratch_operands = 0 : i64, tpu.core_type = #tpu.core_type<tc>, window_params = [{transform_indices = @transform_0, window_bounds = array<i64: 1, 1>}, {transform_indices = @transform_1, window_bounds = array<i64: 8, 16>}, {pipeline_mode = #tpu.pipeline_mode<synchronous>, transform_indices = @transform_2, window_bounds = array<i64: 121, 32>}, {pipeline_mode = #tpu.pipeline_mode<synchronous>, transform_indices = @transform_3, window_bounds = array<i64: 33, 128>}, {transform_indices = @transform_4, window_bounds = array<i64: 8, 128>}]} {
    %c112 = arith.constant 112 : index
    %c0 = arith.constant 0 : index
    %0 = vector.load %arg3[%c112, %c0] : memref<121x32xf32, #tpu.memory_space<vmem>>, vector<9x32xf32>
    %c0_0 = arith.constant 0 : index
    %c0_1 = arith.constant 0 : index
    %1 = memref.load %arg1[%c0_0, %c0_1] : memref<1x1xf32, #tpu.memory_space<smem>>
    %cst = arith.constant 0.00999999977 : f32
    %2 = arith.mulf %1, %cst : f32
    %3 = vector.extract_strided_slice %0 {offsets = [0, 0], sizes = [1, 32], strides = [1, 1]} : vector<9x32xf32> to vector<1x32xf32>
    %4 = vector.broadcast %2 : f32 to vector<1x32xf32>
    %5 = arith.mulf %4, %3 : vector<1x32xf32>
    %6 = vector.extract_strided_slice %0 {offsets = [1, 0], sizes = [1, 32], strides = [1, 1]} : vector<9x32xf32> to vector<1x32xf32>
    %7 = arith.addf %5, %6 : vector<1x32xf32>
    %8 = arith.negf %7 : vector<1x32xf32>
    %9 = math.exp %8 : vector<1x32xf32>
    %cst_2 = arith.constant 1.000000e+00 : f32
    %10 = vector.broadcast %cst_2 : f32 to vector<1x32xf32>
    %11 = arith.addf %10, %9 : vector<1x32xf32>
    %12 = arith.divf %10, %11 : vector<1x32xf32>
    %13 = arith.mulf %7, %12 : vector<1x32xf32>
    %c48 = arith.constant 48 : index
    %c0_3 = arith.constant 0 : index
    %14 = vector.load %arg3[%c48, %c0_3] : memref<121x32xf32, #tpu.memory_space<vmem>>, vector<32x32xf32>
    %cst_4 = arith.constant dense<0.000000e+00> : vector<1x32xf32>
    %15 = tpu.matmul %13, %14, %cst_4 {dimension_numbers = #tpu.dot_dimension_numbers<[1], [0], [0], [1], [0, 0, 1, 1], [], []>} : vector<1x32xf32>, vector<32x32xf32>, vector<1x32xf32> -> vector<1x32xf32>
    %16 = vector.extract_strided_slice %0 {offsets = [2, 0], sizes = [1, 32], strides = [1, 1]} : vector<9x32xf32> to vector<1x32xf32>
    %17 = arith.addf %15, %16 : vector<1x32xf32>
    %c0_5 = arith.constant 0 : index
    %c0_6 = arith.constant 0 : index
    %18 = vector.load %arg3[%c0_5, %c0_6] : memref<121x32xf32, #tpu.memory_space<vmem>>, vector<16x32xf32>
    %c16 = arith.constant 16 : index
    %c0_7 = arith.constant 0 : index
    %19 = vector.load %arg3[%c16, %c0_7] : memref<121x32xf32, #tpu.memory_space<vmem>>, vector<32x32xf32>
    %cst_8 = arith.constant dense<0.000000e+00> : vector<1x32xf32>
    %20 = tpu.matmul %17, %19, %cst_8 {dimension_numbers = #tpu.dot_dimension_numbers<[1], [0], [0], [1], [0, 0, 1, 1], [], []>} : vector<1x32xf32>, vector<32x32xf32>, vector<1x32xf32> -> vector<1x32xf32>
    %21 = vector.extract_strided_slice %0 {offsets = [3, 0], sizes = [1, 32], strides = [1, 1]} : vector<9x32xf32> to vector<1x32xf32>
    %22 = arith.addf %20, %21 : vector<1x32xf32>
    %c0_9 = arith.constant 0 : index
    %c0_10 = arith.constant 0 : index
    %23 = vector.load %arg2[%c0_9, %c0_10] : memref<8x16xf32, #tpu.memory_space<vmem>>, vector<8x16xf32>
    %cst_11 = arith.constant dense<0.000000e+00> : vector<8x32xf32>
    %24 = tpu.matmul %23, %18, %cst_11 {dimension_numbers = #tpu.dot_dimension_numbers<[1], [0], [0], [1], [0, 0, 1, 1], [], []>} : vector<8x16xf32>, vector<16x32xf32>, vector<8x32xf32> -> vector<8x32xf32>
    %25 = vector.broadcast %22 : vector<1x32xf32> to vector<8x32xf32>
    %26 = arith.addf %24, %25 : vector<8x32xf32>
    %27 = vector.extract_strided_slice %0 {offsets = [4, 0], sizes = [1, 32], strides = [1, 1]} : vector<9x32xf32> to vector<1x32xf32>
    %28 = vector.extract_strided_slice %0 {offsets = [5, 0], sizes = [1, 32], strides = [1, 1]} : vector<9x32xf32> to vector<1x32xf32>
    %cst_12 = arith.constant dense<0.000000e+00> : vector<8xf32>
    %29 = vector.multi_reduction <add>, %26, %cst_12 [1] : vector<8x32xf32> to vector<8xf32>
    %30 = vector.shape_cast %29 : vector<8xf32> to vector<8x1xf32>
    %31 = arith.mulf %26, %26 : vector<8x32xf32>
    %cst_13 = arith.constant dense<0.000000e+00> : vector<8xf32>
    %32 = vector.multi_reduction <add>, %31, %cst_13 [1] : vector<8x32xf32> to vector<8xf32>
    %33 = vector.shape_cast %32 : vector<8xf32> to vector<8x1xf32>
    %cst_14 = arith.constant 3.125000e-02 : f32
    %34 = vector.broadcast %cst_14 : f32 to vector<8x1xf32>
    %35 = arith.mulf %30, %34 : vector<8x1xf32>
    %cst_15 = arith.constant 3.125000e-02 : f32
    %36 = vector.broadcast %cst_15 : f32 to vector<8x1xf32>
    %37 = arith.mulf %33, %36 : vector<8x1xf32>
    %38 = arith.mulf %35, %35 : vector<8x1xf32>
    %39 = arith.subf %37, %38 : vector<8x1xf32>
    %40 = vector.broadcast %35 : vector<8x1xf32> to vector<8x32xf32>
    %41 = arith.subf %26, %40 : vector<8x32xf32>
    %cst_16 = arith.constant 9.99999974E-6 : f32
    %42 = vector.broadcast %cst_16 : f32 to vector<8x1xf32>
    %43 = arith.addf %39, %42 : vector<8x1xf32>
    %44 = math.rsqrt %43 : vector<8x1xf32>
    %45 = vector.broadcast %44 : vector<8x1xf32> to vector<8x32xf32>
    %46 = arith.mulf %41, %45 : vector<8x32xf32>
    %47 = vector.broadcast %27 : vector<1x32xf32> to vector<8x32xf32>
    %48 = arith.mulf %46, %47 : vector<8x32xf32>
    %49 = vector.broadcast %28 : vector<1x32xf32> to vector<8x32xf32>
    %50 = arith.addf %48, %49 : vector<8x32xf32>
    %51 = arith.negf %50 : vector<8x32xf32>
    %52 = math.exp %51 : vector<8x32xf32>
    %cst_17 = arith.constant 1.000000e+00 : f32
    %53 = vector.broadcast %cst_17 : f32 to vector<8x32xf32>
    %54 = arith.addf %53, %52 : vector<8x32xf32>
    %55 = arith.divf %53, %54 : vector<8x32xf32>
    %56 = arith.mulf %50, %55 : vector<8x32xf32>
    %c80 = arith.constant 80 : index
    %c0_18 = arith.constant 0 : index
    %57 = vector.load %arg3[%c80, %c0_18] : memref<121x32xf32, #tpu.memory_space<vmem>>, vector<32x32xf32>
    %cst_19 = arith.constant dense<0.000000e+00> : vector<8x32xf32>
    %58 = tpu.matmul %56, %57, %cst_19 {dimension_numbers = #tpu.dot_dimension_numbers<[1], [0], [0], [1], [0, 0, 1, 1], [], []>} : vector<8x32xf32>, vector<32x32xf32>, vector<8x32xf32> -> vector<8x32xf32>
    %59 = vector.extract_strided_slice %0 {offsets = [6, 0], sizes = [1, 32], strides = [1, 1]} : vector<9x32xf32> to vector<1x32xf32>
    %60 = vector.broadcast %59 : vector<1x32xf32> to vector<8x32xf32>
    %61 = arith.addf %58, %60 : vector<8x32xf32>
    %62 = vector.extract_strided_slice %0 {offsets = [7, 0], sizes = [1, 32], strides = [1, 1]} : vector<9x32xf32> to vector<1x32xf32>
    %63 = vector.extract_strided_slice %0 {offsets = [8, 0], sizes = [1, 32], strides = [1, 1]} : vector<9x32xf32> to vector<1x32xf32>
    %cst_20 = arith.constant dense<0.000000e+00> : vector<8xf32>
    %64 = vector.multi_reduction <add>, %61, %cst_20 [1] : vector<8x32xf32> to vector<8xf32>
    %65 = vector.shape_cast %64 : vector<8xf32> to vector<8x1xf32>
    %66 = arith.mulf %61, %61 : vector<8x32xf32>
    %cst_21 = arith.constant dense<0.000000e+00> : vector<8xf32>
    %67 = vector.multi_reduction <add>, %66, %cst_21 [1] : vector<8x32xf32> to vector<8xf32>
    %68 = vector.shape_cast %67 : vector<8xf32> to vector<8x1xf32>
    %cst_22 = arith.constant 3.125000e-02 : f32
    %69 = vector.broadcast %cst_22 : f32 to vector<8x1xf32>
    %70 = arith.mulf %65, %69 : vector<8x1xf32>
    %cst_23 = arith.constant 3.125000e-02 : f32
    %71 = vector.broadcast %cst_23 : f32 to vector<8x1xf32>
    %72 = arith.mulf %68, %71 : vector<8x1xf32>
    %73 = arith.mulf %70, %70 : vector<8x1xf32>
    %74 = arith.subf %72, %73 : vector<8x1xf32>
    %75 = vector.broadcast %70 : vector<8x1xf32> to vector<8x32xf32>
    %76 = arith.subf %61, %75 : vector<8x32xf32>
    %cst_24 = arith.constant 9.99999974E-6 : f32
    %77 = vector.broadcast %cst_24 : f32 to vector<8x1xf32>
    %78 = arith.addf %74, %77 : vector<8x1xf32>
    %79 = math.rsqrt %78 : vector<8x1xf32>
    %80 = vector.broadcast %79 : vector<8x1xf32> to vector<8x32xf32>
    %81 = arith.mulf %76, %80 : vector<8x32xf32>
    %82 = vector.broadcast %62 : vector<1x32xf32> to vector<8x32xf32>
    %83 = arith.mulf %81, %82 : vector<8x32xf32>
    %84 = vector.broadcast %63 : vector<1x32xf32> to vector<8x32xf32>
    %85 = arith.addf %83, %84 : vector<8x32xf32>
    %86 = arith.negf %85 : vector<8x32xf32>
    %87 = math.exp %86 : vector<8x32xf32>
    %cst_25 = arith.constant 1.000000e+00 : f32
    %88 = vector.broadcast %cst_25 : f32 to vector<8x32xf32>
    %89 = arith.addf %88, %87 : vector<8x32xf32>
    %90 = arith.divf %88, %89 : vector<8x32xf32>
    %91 = arith.mulf %85, %90 : vector<8x32xf32>
    %c0_26 = arith.constant 0 : index
    %c0_27 = arith.constant 0 : index
    %92 = vector.load %arg4[%c0_26, %c0_27] : memref<33x128xf32, #tpu.memory_space<vmem>>, vector<32x128xf32>
    %c32 = arith.constant 32 : index
    %c0_28 = arith.constant 0 : index
    %93 = vector.load %arg4[%c32, %c0_28] : memref<33x128xf32, #tpu.memory_space<vmem>>, vector<1x128xf32>
    %cst_29 = arith.constant dense<0.000000e+00> : vector<8x128xf32>
    %94 = tpu.matmul %91, %92, %cst_29 {dimension_numbers = #tpu.dot_dimension_numbers<[1], [0], [0], [1], [0, 0, 1, 1], [], []>} : vector<8x32xf32>, vector<32x128xf32>, vector<8x128xf32> -> vector<8x128xf32>
    %95 = vector.broadcast %93 : vector<1x128xf32> to vector<8x128xf32>
    %96 = arith.addf %94, %95 : vector<8x128xf32>
    %c0_30 = arith.constant 0 : index
    %c0_31 = arith.constant 0 : index
    %97 = vector.load %arg5[%c0_30, %c0_31] : memref<8x128xf32, #tpu.memory_space<vmem>>, vector<8x128xf32>
    tpu.vector_store %arg5[%c0_30, %c0_31], %96 {strides = array<i32>} : memref<8x128xf32, #tpu.memory_space<vmem>>, vector<8x128xf32>,
    return
  }
  func.func @transform_0(%arg0: i32) -> (i32, i32) {
    %c0_i32 = arith.constant 0 : i32
    %c0_i32_0 = arith.constant 0 : i32
    %c0_i32_1 = arith.constant 0 : i32
    return %c0_i32, %c0_i32_0 : i32, i32
  }
  func.func @transform_1(%arg0: i32) -> (i32, i32) {
    %c0_i32 = arith.constant 0 : i32
    %c0_i32_0 = arith.constant 0 : i32
    return %arg0, %c0_i32 : i32, i32
  }
  func.func @transform_2(%arg0: i32) -> (i32, i32) {
    %c0_i32 = arith.constant 0 : i32
    %c0_i32_0 = arith.constant 0 : i32
    %c0_i32_1 = arith.constant 0 : i32
    return %c0_i32, %c0_i32_0 : i32, i32
  }
  func.func @transform_3(%arg0: i32) -> (i32, i32) {
    %c0_i32 = arith.constant 0 : i32
    %c0_i32_0 = arith.constant 0 : i32
    %c0_i32_1 = arith.constant 0 : i32
    return %c0_i32, %c0_i32_0 : i32, i32
  }
  func.func @transform_4(%arg0: i32) -> (i32, i32) {
    %c0_i32 = arith.constant 0 : i32
    %c0_i32_0 = arith.constant 0 : i32
    return %arg0, %c0_i32 : i32, i32
  }
}

</mosaic_0001>

<llo_original>
// kernel: tpu_custom_call.1
$region0: #{tpu_custom_call.1}
  #allocation0 [shape = 'u32[]', space=smem, size = 0x4, offset = 0x4, fixed_abs, tag = 'smem constant byte address 0x4 - core index']
  #allocation1 [shape = 'u32[144,128]{1,0:T(1,128)}', space=vmem, size = 0x12000, scoped, tag = 'internal scratch']
  #allocation2 [shape = 'f32[1,1]{1,0:T(1,128)S(6)}', space=smem, size = 0x200, scoped, tag = 'scoped memory for tpu_custom_call.1']
  %s0 = inlined_call_operand.<no memory space> [shape: f32[1,1], index: 0, kind: input, shape index: {}]
  %s1 = inlined_call_operand.vmem [shape: f32[8,16], index: 1, kind: input, shape index: {}]
  %s2 = inlined_call_operand.vmem [shape: f32[121,32], index: 2, kind: input, shape index: {}]
  %s3 = inlined_call_operand.vmem [shape: f32[33,128], index: 3, kind: input, shape index: {}]
  %s4 = inlined_call_operand.hbm [shape: f32[8,128], index: 4, kind: output, shape index: {}]
  %s5 = sld [smem:[#allocation0]]
  $region26: #{tpu_custom_call.1} parent=0
    _
  %s7 = ssub.s32 1, %s5
  %s8 = scalar_select 0, %s7, %s5
  %9 = sst [smem:[#allocation2]] %s0
  $region1: #{tpu_custom_call.1} parent=0
    #allocation3 [shape = 'u8[4096]{0}', space=vmem, size = 0x1000, scoped, tag = 'output window, operand 0, single buffered']
    #allocation4 [shape = 's32[1]{0}', space=sflag, size = 0x4, scoped, tag = 'scoped memory for tpu_custom_call.1']
    %10 = vsyncpa [#allocation4], 0
    // Predicated region
    $region2: #{tpu_custom_call.1} parent=1 // pred_check
      _
    $region3: #{tpu_custom_call.1} parent=1 // pred_check_branch
      %12 = sbr.rel (0) target = $region5
    $region4: #{tpu_custom_call.1} parent=1 // pred_region
      _
    $region5: #{tpu_custom_call.1} parent=1 // pred_fallthru
      _
    // Predicated region
    $region6: #{tpu_custom_call.1} parent=1 // pred_check
      _
    $region7: #{tpu_custom_call.1} parent=1 // pred_check_branch
      %14 = sbr.rel (0) target = $region9
    $region8: #{tpu_custom_call.1} parent=1 // pred_region
      _
    $region9: #{tpu_custom_call.1} parent=1 // pred_fallthru
      _
    // Predicated region
    $region10: #{tpu_custom_call.1} parent=1 // pred_check
      _
    $region11: #{tpu_custom_call.1} parent=1 // pred_check_branch
      %16 = sbr.rel (0) target = $region13
    $region12: #{tpu_custom_call.1} parent=1 // pred_region
      _
    $region13: #{tpu_custom_call.1} parent=1 // pred_fallthru
      _
    // Predicated region
    $region14: #{tpu_custom_call.1} parent=1 // pred_check
      _
    $region15: #{tpu_custom_call.1} parent=1 // pred_check_branch
      %18 = sbr.rel (0) target = $region17
    $region16: #{tpu_custom_call.1} parent=1 // pred_region
      _
    $region17: #{tpu_custom_call.1} parent=1 // pred_fallthru
      _
    %v19 = vld [vmem:[%s2 + $0x70] sm:$0xff]
    %v20 = vld [vmem:[%s2 + $0x78] sm:$0x1]
    %s21 = sld [smem:[#allocation2]]
    %s22 = smul.f32 %s21, 0.01
    %v23 = vstv %s22
    %v24 = vmul.f32 %v23, %v19
    %v26 = vrot.slane %v19, 1
    %v28 = vadd.f32 %v24, %v26
    %v29 = vxor.u32 %v28, 2147483648
    %v30 = vmul.f32 %v29, 1.442695
    %v31 = vpow.pop %v30
    %v32 = vadd.f32 %v31, 1.0
    %v33 = vrcp.pop %v32
    %v34 = vmul.f32 1.0, %v33
    %v35 = vmul.f32 %v28, %v34
    %v36 = vld [vmem:[%s2 + $0x30] sm:$0xff]
    %v37 = vld [vmem:[%s2 + $0x38] sm:$0xff]
    %v38 = vld [vmem:[%s2 + $0x40] sm:$0xff]
    %v39 = vld [vmem:[%s2 + $0x48] sm:$0xff]
    %v40 = vrot.slane %v19, 2
    %vm42 = vcmask 261120
    %v44 = vsel %vm42, %v35, 0
    %46 = vmatprep.subr.mxu0 0.0
    %47 = vmatpush1.msra.mxu0 %v36
    %48 = vmatprep.subr.mxu0 0.0
    %49 = vmatpush1.msra.mxu0 %v37
    %50 = vmatprep.subr.mxu0 0.0
    %51 = vmatpush1.msra.mxu0 %v38
    %52 = vmatprep.subr.mxu0 0.0
    %53 = vmatpush1.msra.mxu0 %v39
    %54 = vmatprep.subr.mxu0 0.0
    %55 = vmatpush1.msra.mxu0 0.0
    %56 = vmatprep.subr.mxu0 0.0
    %57 = vmatpush1.msra.mxu0 0.0
    %58 = vmatprep.subr.mxu0 0.0
    %59 = vmatpush1.msra.mxu0 0.0
    %60 = vmatprep.subr.mxu0 0.0
    %61 = vmatpush1.msra.mxu0 0.0
    %62 = vmatprep.subr.mxu0 0.0
    %63 = vmatpush1.msra.mxu0 0.0
    %64 = vmatprep.subr.mxu0 0.0
    %65 = vmatpush1.msra.mxu0 0.0
    %66 = vmatprep.subr.mxu0 0.0
    %67 = vmatpush1.msra.mxu0 0.0
    %68 = vmatprep.subr.mxu0 0.0
    %69 = vmatpush1.msra.mxu0 0.0
    %70 = vmatprep.subr.mxu0 0.0
    %71 = vmatpush1.msra.mxu0 0.0
    %72 = vmatprep.subr.mxu0 0.0
    %73 = vmatpush1.msra.mxu0 0.0
    %74 = vmatprep.subr.mxu0 0.0
    %75 = vmatpush1.msra.mxu0 0.0
    %76 = vmatprep.subr.mxu0 0.0
    %77 = vmatpush1.msra.mxu0 0.0
    %78 = vmatprep.subr.mxu0 0.0
    %79 = vmatpush1.msra.mxu0 0.0
    %80 = vmatprep.subr.mxu0 0.0
    %81 = vmatpush1.msra.mxu0 0.0
    %82 = vmatprep.subr.mxu0 0.0
    %83 = vmatpush1.msra.mxu0 0.0
    %84 = vmatprep.subr.mxu0 0.0
    %85 = vmatpush1.msra.mxu0 0.0
    %86 = vmatprep.subr.mxu0 0.0
    %87 = vmatpush1.msra.mxu0 0.0
    %88 = vmatprep.subr.mxu0 0.0
    %89 = vmatpush1.msra.mxu0 0.0
    %90 = vmatprep.subr.mxu0 0.0
    %91 = vmatpush1.msra.mxu0 0.0
    %92 = vmatprep.subr.mxu0 0.0
    %93 = vmatpush1.msra.mxu0 0.0
    %94 = vmatprep.subr.mxu0 0.0
    %95 = vmatpush1.msra.mxu0 0.0
    %96 = vmatprep.subr.mxu0 0.0
    %97 = vmatpush1.msra.mxu0 0.0
    %98 = vmatprep.subr.mxu0 0.0
    %99 = vmatpush1.msra.mxu0 0.0
    %100 = vmatprep.subr.mxu0 0.0
    %101 = vmatpush1.msra.mxu0 0.0
    %102 = vmatprep.subr.mxu0 0.0
    %103 = vmatpush1.msra.mxu0 0.0
    %104 = vmatprep.subr.mxu0 0.0
    %105 = vmatpush1.msra.mxu0 0.0
    %106 = vmatprep.subr.mxu0 0.0
    %107 = vmatpush1.msra.mxu0 0.0
    %108 = vmatprep.subr.mxu0 0.0
    %109 = vmatpush1.msra.mxu0 0.0
    %110 = vmatprep.mubr.f32.mxu0 0.0
    %111 = vmatmul.mubr.f32.gmra.mrb[0].mxu0 %v44
    %v112 = vpop.f32.mrb[0].mxu0
    %v113 = vadd.f32 %v40, %v112
    %v114 = vpop.f32.mrb[0].mxu0
    %115 = vdwg.mxu0
    %v116 = vld [vmem:[%s2] sm:$0xff]
    %v117 = vld [vmem:[%s2 + $0x8] sm:$0xff]
    %v118 = vld [vmem:[%s2 + $0x10] sm:$0xff]
    %v119 = vld [vmem:[%s2 + $0x18] sm:$0xff]
    %v120 = vld [vmem:[%s2 + $0x20] sm:$0xff]
    %v121 = vld [vmem:[%s2 + $0x28] sm:$0xff]
    %v122 = vrot.slane %v19, 3
    %v125 = vsel %vm42, %v113, 0
    %127 = vmatprep.subr.mxu0 0.0
    %128 = vmatpush1.msra.mxu0 %v118
    %129 = vmatprep.subr.mxu0 0.0
    %130 = vmatpush1.msra.mxu0 %v119
    %131 = vmatprep.subr.mxu0 0.0
    %132 = vmatpush1.msra.mxu0 %v120
    %133 = vmatprep.subr.mxu0 0.0
    %134 = vmatpush1.msra.mxu0 %v121
    %135 = vmatprep.subr.mxu0 0.0
    %136 = vmatpush1.msra.mxu0 0.0
    %137 = vmatprep.subr.mxu0 0.0
    %138 = vmatpush1.msra.mxu0 0.0
    %139 = vmatprep.subr.mxu0 0.0
    %140 = vmatpush1.msra.mxu0 0.0
    %141 = vmatprep.subr.mxu0 0.0
    %142 = vmatpush1.msra.mxu0 0.0
    %143 = vmatprep.subr.mxu0 0.0
    %144 = vmatpush1.msra.mxu0 0.0
    %145 = vmatprep.subr.mxu0 0.0
    %146 = vmatpush1.msra.mxu0 0.0
    %147 = vmatprep.subr.mxu0 0.0
    %148 = vmatpush1.msra.mxu0 0.0
    %149 = vmatprep.subr.mxu0 0.0
    %150 = vmatpush1.msra.mxu0 0.0
    %151 = vmatprep.subr.mxu0 0.0
    %152 = vmatpush1.msra.mxu0 0.0
    %153 = vmatprep.subr.mxu0 0.0
    %154 = vmatpush1.msra.mxu0 0.0
    %155 = vmatprep.subr.mxu0 0.0
    %156 = vmatpush1.msra.mxu0 0.0
    %157 = vmatprep.subr.mxu0 0.0
    %158 = vmatpush1.msra.mxu0 0.0
    %159 = vmatprep.subr.mxu0 0.0
    %160 = vmatpush1.msra.mxu0 0.0
    %161 = vmatprep.subr.mxu0 0.0
    %162 = vmatpush1.msra.mxu0 0.0
    %163 = vmatprep.subr.mxu0 0.0
    %164 = vmatpush1.msra.mxu0 0.0
    %165 = vmatprep.subr.mxu0 0.0
    %166 = vmatpush1.msra.mxu0 0.0
    %167 = vmatprep.subr.mxu0 0.0
    %168 = vmatpush1.msra.mxu0 0.0
    %169 = vmatprep.subr.mxu0 0.0
    %170 = vmatpush1.msra.mxu0 0.0
    %171 = vmatprep.subr.mxu0 0.0
    %172 = vmatpush1.msra.mxu0 0.0
    %173 = vmatprep.subr.mxu0 0.0
    %174 = vmatpush1.msra.mxu0 0.0
    %175 = vmatprep.subr.mxu0 0.0
    %176 = vmatpush1.msra.mxu0 0.0
    %177 = vmatprep.subr.mxu0 0.0
    %178 = vmatpush1.msra.mxu0 0.0
    %179 = vmatprep.subr.mxu0 0.0
    %180 = vmatpush1.msra.mxu0 0.0
    %181 = vmatprep.subr.mxu0 0.0
    %182 = vmatpush1.msra.mxu0 0.0
    %183 = vmatprep.subr.mxu0 0.0
    %184 = vmatpush1.msra.mxu0 0.0
    %185 = vmatprep.subr.mxu0 0.0
    %186 = vmatpush1.msra.mxu0 0.0
    %187 = vmatprep.subr.mxu0 0.0
    %188 = vmatpush1.msra.mxu0 0.0
    %189 = vmatprep.subr.mxu0 0.0
    %190 = vmatpush1.msra.mxu0 0.0
    %191 = vmatprep.mubr.f32.mxu0 0.0
    %192 = vmatmul.mubr.f32.gmra.mrb[0].mxu0 %v125
    %v193 = vpop.f32.mrb[0].mxu0
    %v194 = vadd.f32 %v122, %v193
    %v195 = vpop.f32.mrb[0].mxu0
    %196 = vdwg.mxu0
    %v197 = vld [vmem:[%s1] sm:$0xff]
    %v198 = vlaneseq
    %v199 = vshrl.u32 %v198, 7
    %v200 = vsub.s32 0, %v199
    %v201 = vrot.slane %v194, %v200
    %vm202 = vcmask 130048
    %v204 = vsel %vm202, %v197, 0
    %206 = vmatprep.subr.mxu0 0.0
    %207 = vmatpush1.msra.mxu0 %v116
    %208 = vmatprep.subr.mxu0 0.0
    %209 = vmatpush1.msra.mxu0 %v117
    %210 = vmatprep.subr.mxu0 0.0
    %211 = vmatpush1.msra.mxu0 0.0
    %212 = vmatprep.subr.mxu0 0.0
    %213 = vmatpush1.msra.mxu0 0.0
    %214 = vmatprep.subr.mxu0 0.0
    %215 = vmatpush1.msra.mxu0 0.0
    %216 = vmatprep.subr.mxu0 0.0
    %217 = vmatpush1.msra.mxu0 0.0
    %218 = vmatprep.subr.mxu0 0.0
    %219 = vmatpush1.msra.mxu0 0.0
    %220 = vmatprep.subr.mxu0 0.0
    %221 = vmatpush1.msra.mxu0 0.0
    %222 = vmatprep.subr.mxu0 0.0
    %223 = vmatpush1.msra.mxu0 0.0
    %224 = vmatprep.subr.mxu0 0.0
    %225 = vmatpush1.msra.mxu0 0.0
    %226 = vmatprep.subr.mxu0 0.0
    %227 = vmatpush1.msra.mxu0 0.0
    %228 = vmatprep.subr.mxu0 0.0
    %229 = vmatpush1.msra.mxu0 0.0
    %230 = vmatprep.subr.mxu0 0.0
    %231 = vmatpush1.msra.mxu0 0.0
    %232 = vmatprep.subr.mxu0 0.0
    %233 = vmatpush1.msra.mxu0 0.0
    %234 = vmatprep.subr.mxu0 0.0
    %235 = vmatpush1.msra.mxu0 0.0
    %236 = vmatprep.subr.mxu0 0.0
    %237 = vmatpush1.msra.mxu0 0.0
    %238 = vmatprep.subr.mxu0 0.0
    %239 = vmatpush1.msra.mxu0 0.0
    %240 = vmatprep.subr.mxu0 0.0
    %241 = vmatpush1.msra.mxu0 0.0
    %242 = vmatprep.subr.mxu0 0.0
    %243 = vmatpush1.msra.mxu0 0.0
    %244 = vmatprep.subr.mxu0 0.0
    %245 = vmatpush1.msra.mxu0 0.0
    %246 = vmatprep.subr.mxu0 0.0
    %247 = vmatpush1.msra.mxu0 0.0
    %248 = vmatprep.subr.mxu0 0.0
    %249 = vmatpush1.msra.mxu0 0.0
    %250 = vmatprep.subr.mxu0 0.0
    %251 = vmatpush1.msra.mxu0 0.0
    %252 = vmatprep.subr.mxu0 0.0
    %253 = vmatpush1.msra.mxu0 0.0
    %254 = vmatprep.subr.mxu0 0.0
    %255 = vmatpush1.msra.mxu0 0.0
    %256 = vmatprep.subr.mxu0 0.0
    %257 = vmatpush1.msra.mxu0 0.0
    %258 = vmatprep.subr.mxu0 0.0
    %259 = vmatpush1.msra.mxu0 0.0
    %260 = vmatprep.subr.mxu0 0.0
    %261 = vmatpush1.msra.mxu0 0.0
    %262 = vmatprep.subr.mxu0 0.0
    %263 = vmatpush1.msra.mxu0 0.0
    %264 = vmatprep.subr.mxu0 0.0
    %265 = vmatpush1.msra.mxu0 0.0
    %266 = vmatprep.subr.mxu0 0.0
    %267 = vmatpush1.msra.mxu0 0.0
    %268 = vmatprep.subr.mxu0 0.0
    %269 = vmatpush1.msra.mxu0 0.0
    %270 = vmatprep.mubr.f32.mxu0 0.0
    %271 = vmatmul.mubr.f32.gmra.mrb[0].mxu0 %v204
    %v272 = vpop.f32.mrb[0].mxu0
    %v273 = vadd.f32 %v201, %v272
    %v274 = vpop.f32.mrb[0].mxu0
    %275 = vdwg.mxu0
    %v276 = vsel %vm42, %v273, 0.0
    %277 = vadd.xlane.f32.xlu0 %v276
    %v278 = vpop.xlane.xlu0 %277
    %v279 = vmul.f32 %v273, %v273
    %v280 = vsel %vm42, %v279, 0.0
    %281 = vadd.xlane.f32.xlu0 %v280
    %v282 = vpop.xlane.xlu0 %281
    %v283 = vmul.f32 %v278, 0.03125
    %v284 = vmul.f32 %v282, 0.03125
    %v285 = vmul.f32 %v283, %v283
    %v286 = vsub.f32 %v284, %v285
    %v287 = vsub.f32 %v273, %v283
    %v288 = vadd.f32 %v286, 1e-05
    %v289 = vrsqrt.pop %v288
    %v290 = vmul.f32 %v287, %v289
    %v291 = vlaneseq
    %v292 = vshrl.u32 %v291, 7
    %v293 = vsub.s32 4, %v292
    %v294 = vrot.slane %v19, %v293
    %v295 = vmul.f32 %v290, %v294
    %v296 = vlaneseq
    %v297 = vshrl.u32 %v296, 7
    %v298 = vsub.s32 5, %v297
    %v299 = vrot.slane %v19, %v298
    %v300 = vadd.f32 %v295, %v299
    %v301 = vxor.u32 %v300, 2147483648
    %v302 = vmul.f32 %v301, 1.442695
    %v303 = vpow.pop %v302
    %v304 = vadd.f32 %v303, 1.0
    %v305 = vrcp.pop %v304
    %v306 = vmul.f32 1.0, %v305
    %v307 = vmul.f32 %v300, %v306
    %v308 = vld [vmem:[%s2 + $0x50] sm:$0xff]
    %v309 = vld [vmem:[%s2 + $0x58] sm:$0xff]
    %v310 = vld [vmem:[%s2 + $0x60] sm:$0xff]
    %v311 = vld [vmem:[%s2 + $0x68] sm:$0xff]
    %v312 = vlaneseq
    %v313 = vshrl.u32 %v312, 7
    %v314 = vsub.s32 6, %v313
    %v315 = vrot.slane %v19, %v314
    %v317 = vsel %vm42, %v307, 0
    %319 = vmatprep.subr.mxu0 0.0
    %320 = vmatpush1.msra.mxu0 %v308
    %321 = vmatprep.subr.mxu0 0.0
    %322 = vmatpush1.msra.mxu0 %v309
    %323 = vmatprep.subr.mxu0 0.0
    %324 = vmatpush1.msra.mxu0 %v310
    %325 = vmatprep.subr.mxu0 0.0
    %326 = vmatpush1.msra.mxu0 %v311
    %327 = vmatprep.subr.mxu0 0.0
    %328 = vmatpush1.msra.mxu0 0.0
    %329 = vmatprep.subr.mxu0 0.0
    %330 = vmatpush1.msra.mxu0 0.0
    %331 = vmatprep.subr.mxu0 0.0
    %332 = vmatpush1.msra.mxu0 0.0
    %333 = vmatprep.subr.mxu0 0.0
    %334 = vmatpush1.msra.mxu0 0.0
    %335 = vmatprep.subr.mxu0 0.0
    %336 = vmatpush1.msra.mxu0 0.0
    %337 = vmatprep.subr.mxu0 0.0
    %338 = vmatpush1.msra.mxu0 0.0
    %339 = vmatprep.subr.mxu0 0.0
    %340 = vmatpush1.msra.mxu0 0.0
    %341 = vmatprep.subr.mxu0 0.0
    %342 = vmatpush1.msra.mxu0 0.0
    %343 = vmatprep.subr.mxu0 0.0
    %344 = vmatpush1.msra.mxu0 0.0
    %345 = vmatprep.subr.mxu0 0.0
    %346 = vmatpush1.msra.mxu0 0.0
    %347 = vmatprep.subr.mxu0 0.0
    %348 = vmatpush1.msra.mxu0 0.0
    %349 = vmatprep.subr.mxu0 0.0
    %350 = vmatpush1.msra.mxu0 0.0
    %351 = vmatprep.subr.mxu0 0.0
    %352 = vmatpush1.msra.mxu0 0.0
    %353 = vmatprep.subr.mxu0 0.0
    %354 = vmatpush1.msra.mxu0 0.0
    %355 = vmatprep.subr.mxu0 0.0
    %356 = vmatpush1.msra.mxu0 0.0
    %357 = vmatprep.subr.mxu0 0.0
    %358 = vmatpush1.msra.mxu0 0.0
    %359 = vmatprep.subr.mxu0 0.0
    %360 = vmatpush1.msra.mxu0 0.0
    %361 = vmatprep.subr.mxu0 0.0
    %362 = vmatpush1.msra.mxu0 0.0
    %363 = vmatprep.subr.mxu0 0.0
    %364 = vmatpush1.msra.mxu0 0.0
    %365 = vmatprep.subr.mxu0 0.0
    %366 = vmatpush1.msra.mxu0 0.0
    %367 = vmatprep.subr.mxu0 0.0
    %368 = vmatpush1.msra.mxu0 0.0
    %369 = vmatprep.subr.mxu0 0.0
    %370 = vmatpush1.msra.mxu0 0.0
    %371 = vmatprep.subr.mxu0 0.0
    %372 = vmatpush1.msra.mxu0 0.0
    %373 = vmatprep.subr.mxu0 0.0
    %374 = vmatpush1.msra.mxu0 0.0
    %375 = vmatprep.subr.mxu0 0.0
    %376 = vmatpush1.msra.mxu0 0.0
    %377 = vmatprep.subr.mxu0 0.0
    %378 = vmatpush1.msra.mxu0 0.0
    %379 = vmatprep.subr.mxu0 0.0
    %380 = vmatpush1.msra.mxu0 0.0
    %381 = vmatprep.subr.mxu0 0.0
    %382 = vmatpush1.msra.mxu0 0.0
    %383 = vmatprep.mubr.f32.mxu0 0.0
    %384 = vmatmul.mubr.f32.gmra.mrb[0].mxu0 %v317
    %v385 = vpop.f32.mrb[0].mxu0
    %v386 = vadd.f32 %v315, %v385
    %v387 = vpop.f32.mrb[0].mxu0
    %388 = vdwg.mxu0
    %v389 = vsel %vm42, %v386, 0.0
    %390 = vadd.xlane.f32.xlu0 %v389
    %v391 = vpop.xlane.xlu0 %390
    %v392 = vmul.f32 %v386, %v386
    %v393 = vsel %vm42, %v392, 0.0
    %394 = vadd.xlane.f32.xlu0 %v393
    %v395 = vpop.xlane.xlu0 %394
    %v396 = vmul.f32 %v391, 0.03125
    %v397 = vmul.f32 %v395, 0.03125
    %v398 = vmul.f32 %v396, %v396
    %v399 = vsub.f32 %v397, %v398
    %v400 = vsub.f32 %v386, %v396
    %v401 = vadd.f32 %v399, 1e-05
    %v402 = vrsqrt.pop %v401
    %v403 = vmul.f32 %v400, %v402
    %v404 = vlaneseq
    %v405 = vshrl.u32 %v404, 7
    %v406 = vsub.s32 7, %v405
    %v407 = vrot.slane %v19, %v406
    %v408 = vmul.f32 %v403, %v407
    %v409 = vlaneseq
    %v410 = vshrl.u32 %v409, 7
    %v411 = vsub.s32 0, %v410
    %v412 = vrot.slane %v20, %v411
    %v413 = vadd.f32 %v408, %v412
    %v414 = vxor.u32 %v413, 2147483648
    %v415 = vmul.f32 %v414, 1.442695
    %v416 = vpow.pop %v415
    %v417 = vadd.f32 %v416, 1.0
    %v418 = vrcp.pop %v417
    %v419 = vmul.f32 1.0, %v418
    %v420 = vmul.f32 %v413, %v419
    %v421 = vld [vmem:[%s3] sm:$0xff]
    %v422 = vld [vmem:[%s3 + $0x8] sm:$0xff]
    %v423 = vld [vmem:[%s3 + $0x10] sm:$0xff]
    %v424 = vld [vmem:[%s3 + $0x18] sm:$0xff]
    %v425 = vld [vmem:[%s3 + $0x20] sm:$0x1]
    %v426 = vlaneseq
    %v427 = vshrl.u32 %v426, 7
    %v428 = vsub.s32 0, %v427
    %v429 = vrot.slane %v425, %v428
    %v431 = vsel %vm42, %v420, 0
    %433 = vmatprep.subr.mxu0 0.0
    %434 = vmatpush1.msra.mxu0 %v421
    %435 = vmatprep.subr.mxu0 0.0
    %436 = vmatpush1.msra.mxu0 %v422
    %437 = vmatprep.subr.mxu0 0.0
    %438 = vmatpush1.msra.mxu0 %v423
    %439 = vmatprep.subr.mxu0 0.0
    %440 = vmatpush1.msra.mxu0 %v424
    %441 = vmatprep.subr.mxu0 0.0
    %442 = vmatpush1.msra.mxu0 0.0
    %443 = vmatprep.subr.mxu0 0.0
    %444 = vmatpush1.msra.mxu0 0.0
    %445 = vmatprep.subr.mxu0 0.0
    %446 = vmatpush1.msra.mxu0 0.0
    %447 = vmatprep.subr.mxu0 0.0
    %448 = vmatpush1.msra.mxu0 0.0
    %449 = vmatprep.subr.mxu0 0.0
    %450 = vmatpush1.msra.mxu0 0.0
    %451 = vmatprep.subr.mxu0 0.0
    %452 = vmatpush1.msra.mxu0 0.0
    %453 = vmatprep.subr.mxu0 0.0
    %454 = vmatpush1.msra.mxu0 0.0
    %455 = vmatprep.subr.mxu0 0.0
    %456 = vmatpush1.msra.mxu0 0.0
    %457 = vmatprep.subr.mxu0 0.0
    %458 = vmatpush1.msra.mxu0 0.0
    %459 = vmatprep.subr.mxu0 0.0
    %460 = vmatpush1.msra.mxu0 0.0
    %461 = vmatprep.subr.mxu0 0.0
    %462 = vmatpush1.msra.mxu0 0.0
    %463 = vmatprep.subr.mxu0 0.0
    %464 = vmatpush1.msra.mxu0 0.0
    %465 = vmatprep.subr.mxu0 0.0
    %466 = vmatpush1.msra.mxu0 0.0
    %467 = vmatprep.subr.mxu0 0.0
    %468 = vmatpush1.msra.mxu0 0.0
    %469 = vmatprep.subr.mxu0 0.0
    %470 = vmatpush1.msra.mxu0 0.0
    %471 = vmatprep.subr.mxu0 0.0
    %472 = vmatpush1.msra.mxu0 0.0
    %473 = vmatprep.subr.mxu0 0.0
    %474 = vmatpush1.msra.mxu0 0.0
    %475 = vmatprep.subr.mxu0 0.0
    %476 = vmatpush1.msra.mxu0 0.0
    %477 = vmatprep.subr.mxu0 0.0
    %478 = vmatpush1.msra.mxu0 0.0
    %479 = vmatprep.subr.mxu0 0.0
    %480 = vmatpush1.msra.mxu0 0.0
    %481 = vmatprep.subr.mxu0 0.0
    %482 = vmatpush1.msra.mxu0 0.0
    %483 = vmatprep.subr.mxu0 0.0
    %484 = vmatpush1.msra.mxu0 0.0
    %485 = vmatprep.subr.mxu0 0.0
    %486 = vmatpush1.msra.mxu0 0.0
    %487 = vmatprep.subr.mxu0 0.0
    %488 = vmatpush1.msra.mxu0 0.0
    %489 = vmatprep.subr.mxu0 0.0
    %490 = vmatpush1.msra.mxu0 0.0
    %491 = vmatprep.subr.mxu0 0.0
    %492 = vmatpush1.msra.mxu0 0.0
    %493 = vmatprep.subr.mxu0 0.0
    %494 = vmatpush1.msra.mxu0 0.0
    %495 = vmatprep.subr.mxu0 0.0
    %496 = vmatpush1.msra.mxu0 0.0
    %497 = vmatprep.mubr.f32.mxu0 0.0
    %498 = vmatmul.mubr.f32.gmra.mrb[0].mxu0 %v431
    %v499 = vpop.f32.mrb[0].mxu0
    %v500 = vadd.f32 %v429, %v499
    %v501 = vpop.f32.mrb[0].mxu0
    %502 = vdwg.mxu0
    %503 = vst [vmem:[#allocation3] sm:$0xff] %v500
    // Predicated region
    $region18: #{tpu_custom_call.1} parent=1 // pred_check
      _
    $region19: #{tpu_custom_call.1} parent=1 // pred_check_branch
      %505 = sbr.rel (0) target = $region21
    $region20: #{tpu_custom_call.1} parent=1 // pred_region
      %s507 = ssub.s32 128, 128
      %508 = vsyncadd [#allocation4], %s507
      %s510 = sshll.u32 [#allocation3], 4
      %s511 = int_to_ptr.vmem [resolvable:$true] %s510
      %513 = dma.vmem_to_hbm [thread:$0]  %s511, 128, %s4, [#allocation4]
    $region21: #{tpu_custom_call.1} parent=1 // pred_fallthru
      _
    // Predicated region
    $region22: #{tpu_custom_call.1} parent=1 // pred_check
      _
    $region23: #{tpu_custom_call.1} parent=1 // pred_check_branch
      %515 = sbr.rel (0) target = $region25
    $region24: #{tpu_custom_call.1} parent=1 // pred_region
      %516 = dma.done [#allocation4], 128
    $region25: #{tpu_custom_call.1} parent=1 // pred_fallthru
      _
    %517 = vsyncpa [#allocation4], 1

</llo_original>
